<compile_context>
chip_gen: v7x
topology: tpu7x:2x2x1
jax: 0.10.0
libtpu: 0.0.40
codegen_flags: <defaults>
</compile_context>

<pallas_src>
import functools

import jax
import jax.numpy as jnp
from jax import lax
from jax.experimental import pallas as pl
from jax.experimental.pallas import tpu as pltpu

MARGIN = 1.0
COS_EPS = 1e-8  # matches torch.nn.functional.cosine_similarity eps


def _round_up(x: int, m: int) -> int:
    return ((x + m - 1) // m) * m


def _pick_block_rows(batch: int, dim: int, itemsize: int,
                     budget_bytes: int = 40 << 20, max_rows: int = 1024) -> int:
    """Rows per tile: 2 inputs x 2 pipeline buffers x TB x D x itemsize <= budget."""
    per_row = 2 * 2 * dim * itemsize
    tb = budget_bytes // max(per_row, 1)
    tb = int(min(tb, max_rows, _round_up(batch, 8)))
    tb = max(8, (tb // 8) * 8)
    return tb


def _contrastive_kernel(anchor_ref, inst_ref, labels_ref, out_ref, *,
                        block_rows: int, batch: int, margin: float):
    step = pl.program_id(0)

    @pl.when(step == 0)
    def _init():
        out_ref[...] = jnp.zeros_like(out_ref)

    x = anchor_ref[...].astype(jnp.float32)     # (TB, D)
    y = inst_ref[...].astype(jnp.float32)       # (TB, D)
    lab = labels_ref[...].astype(jnp.float32)   # (TB, 1)

    dot = jnp.sum(x * y, axis=-1, keepdims=True)   # (TB, 1)
    xx = jnp.sum(x * x, axis=-1, keepdims=True)    # (TB, 1)
    yy = jnp.sum(y * y, axis=-1, keepdims=True)    # (TB, 1)

    # cos = dot / max(||x||*||y||, eps)  ==  dot * rsqrt(max(||x||^2*||y||^2, eps^2))
    # (single EUP rsqrt; matches torch's clamp-on-product eps semantics)
    cos = dot * lax.rsqrt(jnp.maximum(xx * yy, COS_EPS * COS_EPS))
    dist = 1.0 - cos                                # (TB, 1)

    pos = lab * dist * dist
    neg = (1.0 - lab) * jnp.square(jnp.maximum(margin - dist, 0.0))
    loss = 0.5 * (pos + neg)                        # (TB, 1)

    # Mask rows that are batch-padding (row index >= true batch size).
    row_idx = step * block_rows + lax.broadcasted_iota(jnp.int32, loss.shape, 0)
    valid = (row_idx < batch).astype(jnp.float32)

    out_ref[...] += jnp.sum(loss * valid, keepdims=True)   # (1, 1) partial sum

    @pl.when(step == pl.num_programs(0) - 1)
    def _finalize():
        out_ref[...] = out_ref[...] * (1.0 / float(batch))


def contrastive_loss(anchor: jax.Array, instance: jax.Array, labels: jax.Array,
                     *, margin: float = MARGIN, block_rows: int | None = None) -> jax.Array:
    """anchor, instance: [B, D] (any float dtype); labels: [B] (0/1). Returns scalar loss."""
    B, D = anchor.shape
    itemsize = jnp.dtype(anchor.dtype).itemsize
    tb = block_rows if block_rows is not None else _pick_block_rows(B, D, itemsize)
    tb = max(8, (int(tb) // 8) * 8)

    b_pad = _round_up(B, tb)
    num_tiles = b_pad // tb

    labels2d = labels.astype(jnp.float32).reshape(B, 1)
    if b_pad != B:
        pad = b_pad - B
        anchor = jnp.pad(anchor, ((0, pad), (0, 0)))
        instance = jnp.pad(instance, ((0, pad), (0, 0)))
        labels2d = jnp.pad(labels2d, ((0, pad), (0, 0)))

    # Input double-buffering budget + headroom; keep under v7x's 64 MiB physical VMEM.
    vmem_limit = int(min(max(2 * 2 * tb * D * itemsize + (8 << 20), 32 << 20), 56 << 20))

    kernel = functools.partial(_contrastive_kernel,
                               block_rows=tb, batch=B, margin=float(margin))

    out = pl.pallas_call(
        kernel,
        out_shape=jax.ShapeDtypeStruct((1, 1), jnp.float32),
        grid=(num_tiles,),
        in_specs=[
            pl.BlockSpec((tb, D), lambda i: (i, 0)),   # anchor tile (native dtype)
            pl.BlockSpec((tb, D), lambda i: (i, 0)),   # instance tile (native dtype)
            pl.BlockSpec((tb, 1), lambda i: (i, 0)),   # labels tile
        ],
        out_specs=pl.BlockSpec((1, 1), lambda i: (0, 0)),  # resident accumulator
        compiler_params=pltpu.CompilerParams(
            dimension_semantics=("arbitrary",),  # reduction axis into shared output
            vmem_limit_bytes=vmem_limit,
        ),
    )(anchor, instance, labels2d)
    return out[0, 0]


def _reference(anchor, instance, labels, margin=MARGIN):
    x = anchor.astype(jnp.float32)
    y = instance.astype(jnp.float32)
    lab = labels.astype(jnp.float32)
    dot = jnp.sum(x * y, axis=-1)
    xn = jnp.sqrt(jnp.sum(x * x, axis=-1))
    yn = jnp.sqrt(jnp.sum(y * y, axis=-1))
    cos = dot / jnp.maximum(xn * yn, COS_EPS)
    d = 1.0 - cos
    loss = 0.5 * (lab * d ** 2 + (1.0 - lab) * jnp.maximum(margin - d, 0.0) ** 2)
    return jnp.mean(loss)


if __name__ == "__main__":
    key = jax.random.PRNGKey(0)

    # Test 1: small f32 case (single tile).
    k1, k2, k3 = jax.random.split(key, 3)
    B, D = 8, 32
    anchor = jax.random.normal(k1, (B, D), dtype=jnp.float32)
    instance = jax.random.normal(k2, (B, D), dtype=jnp.float32)
    labels = (jax.random.uniform(k3, (B,)) > 0.5).astype(jnp.float32)

    loss = jax.block_until_ready(contrastive_loss(anchor, instance, labels))
    ref = _reference(anchor, instance, labels)
    assert jnp.allclose(loss, ref, atol=1e-5, rtol=1e-5), (loss, ref)

    # Test 2: bf16 inputs, non-multiple batch, forced small tile -> multi-step grid
    # with padding masked out of the mean (exercises the accumulator path).
    k4, k5, k6 = jax.random.split(jax.random.PRNGKey(1), 3)
    B2, D2 = 20, 128
    anchor2 = jax.random.normal(k4, (B2, D2), dtype=jnp.bfloat16)
    instance2 = jax.random.normal(k5, (B2, D2), dtype=jnp.bfloat16)
    labels2 = (jax.random.uniform(k6, (B2,)) > 0.5).astype(jnp.float32)

    loss2 = jax.block_until_ready(
        contrastive_loss(anchor2, instance2, labels2, block_rows=8))
    ref2 = _reference(anchor2, instance2, labels2)
    assert jnp.allclose(loss2, ref2, atol=1e-4, rtol=1e-4), (loss2, ref2)

    print("KERNEL_OK")
</pallas_src>

<mosaic_0001>
module attributes {stable_mosaic.version = 11 : i64} {
  func.func @_contrastive_kernel(%arg0: i32, %arg1: memref<8x32xf32, #tpu.memory_space<vmem>>, %arg2: memref<8x32xf32, #tpu.memory_space<vmem>>, %arg3: memref<8x1xf32, #tpu.memory_space<vmem>>, %arg4: memref<1x1xf32, #tpu.memory_space<vmem>>) attributes {dimension_semantics = [#tpu.dimension_semantics<arbitrary>], iteration_bounds = array<i64: 1>, scalar_prefetch = 0 : i64, scratch_operands = 0 : i64, tpu.core_type = #tpu.core_type<tc>, window_params = [{transform_indices = @transform_0, window_bounds = array<i64: 8, 32>}, {transform_indices = @transform_1, window_bounds = array<i64: 8, 32>}, {transform_indices = @transform_2, window_bounds = array<i64: 8, 1>}, {pipeline_mode = #tpu.pipeline_mode<synchronous>, transform_indices = @transform_3, window_bounds = array<i64: 1, 1>}]} {
    %c0_i32 = arith.constant 0 : i32
    %0 = arith.cmpi eq, %arg0, %c0_i32 : i32
    %1 = arith.extui %0 : i1 to i32
    %c0_i32_0 = arith.constant 0 : i32
    %2 = arith.cmpi ne, %1, %c0_i32_0 : i32
    scf.if %2 {
      %cst_22 = arith.constant 0.000000e+00 : f32
      %55 = vector.broadcast %cst_22 : f32 to vector<1x1xf32>
      %c0_23 = arith.constant 0 : index
      %c0_24 = arith.constant 0 : index
      %56 = vector.load %arg4[%c0_23, %c0_24] : memref<1x1xf32, #tpu.memory_space<vmem>>, vector<1x1xf32>
      tpu.vector_store %arg4[%c0_23, %c0_24], %55 {strides = array<i32>} : memref<1x1xf32, #tpu.memory_space<vmem>>, vector<1x1xf32>,
    } else {
    }
    %c0 = arith.constant 0 : index
    %c0_1 = arith.constant 0 : index
    %3 = vector.load %arg1[%c0, %c0_1] : memref<8x32xf32, #tpu.memory_space<vmem>>, vector<8x32xf32>
    %c0_2 = arith.constant 0 : index
    %c0_3 = arith.constant 0 : index
    %4 = vector.load %arg2[%c0_2, %c0_3] : memref<8x32xf32, #tpu.memory_space<vmem>>, vector<8x32xf32>
    %c0_4 = arith.constant 0 : index
    %c0_5 = arith.constant 0 : index
    %5 = vector.load %arg3[%c0_4, %c0_5] : memref<8x1xf32, #tpu.memory_space<vmem>>, vector<8x1xf32>
    %6 = arith.mulf %3, %4 : vector<8x32xf32>
    %cst = arith.constant dense<0.000000e+00> : vector<8xf32>
    %7 = vector.multi_reduction <add>, %6, %cst [1] : vector<8x32xf32> to vector<8xf32>
    %8 = vector.shape_cast %7 : vector<8xf32> to vector<8x1xf32>
    %9 = arith.mulf %3, %3 : vector<8x32xf32>
    %cst_6 = arith.constant dense<0.000000e+00> : vector<8xf32>
    %10 = vector.multi_reduction <add>, %9, %cst_6 [1] : vector<8x32xf32> to vector<8xf32>
    %11 = vector.shape_cast %10 : vector<8xf32> to vector<8x1xf32>
    %12 = arith.mulf %4, %4 : vector<8x32xf32>
    %cst_7 = arith.constant dense<0.000000e+00> : vector<8xf32>
    %13 = vector.multi_reduction <add>, %12, %cst_7 [1] : vector<8x32xf32> to vector<8xf32>
    %14 = vector.shape_cast %13 : vector<8xf32> to vector<8x1xf32>
    %15 = arith.mulf %11, %14 : vector<8x1xf32>
    %cst_8 = arith.constant 1.000000e-16 : f32
    %16 = vector.broadcast %cst_8 : f32 to vector<8x1xf32>
    %17 = arith.maximumf %15, %16 : vector<8x1xf32>
    %18 = math.rsqrt %17 : vector<8x1xf32>
    %19 = arith.mulf %8, %18 : vector<8x1xf32>
    %cst_9 = arith.constant 1.000000e+00 : f32
    %20 = vector.broadcast %cst_9 : f32 to vector<8x1xf32>
    %21 = arith.subf %20, %19 : vector<8x1xf32>
    %22 = arith.mulf %5, %21 : vector<8x1xf32>
    %23 = arith.mulf %22, %21 : vector<8x1xf32>
    %cst_10 = arith.constant 1.000000e+00 : f32
    %24 = vector.broadcast %cst_10 : f32 to vector<8x1xf32>
    %25 = arith.subf %24, %5 : vector<8x1xf32>
    %cst_11 = arith.constant 1.000000e+00 : f32
    %26 = vector.broadcast %cst_11 : f32 to vector<8x1xf32>
    %27 = arith.subf %26, %21 : vector<8x1xf32>
    %cst_12 = arith.constant 0.000000e+00 : f32
    %28 = vector.broadcast %cst_12 : f32 to vector<8x1xf32>
    %29 = arith.maximumf %27, %28 : vector<8x1xf32>
    %30 = arith.mulf %29, %29 : vector<8x1xf32>
    %31 = arith.mulf %25, %30 : vector<8x1xf32>
    %32 = arith.addf %23, %31 : vector<8x1xf32>
    %cst_13 = arith.constant 5.000000e-01 : f32
    %33 = vector.broadcast %cst_13 : f32 to vector<8x1xf32>
    %34 = arith.mulf %33, %32 : vector<8x1xf32>
    %c8_i32 = arith.constant 8 : i32
    %35 = arith.muli %arg0, %c8_i32 : i32
    %36 = tpu.iota {dimensions = array<i32: 0>} : vector<8x1xi32>
    %37 = vector.broadcast %35 : i32 to vector<8x1xi32>
    %38 = arith.addi %37, %36 : vector<8x1xi32>
    %c8_i32_14 = arith.constant 8 : i32
    %39 = vector.broadcast %c8_i32_14 : i32 to vector<8x1xi32>
    %40 = arith.cmpi slt, %38, %39 : vector<8x1xi32>
    %41 = arith.extui %40 : vector<8x1xi1> to vector<8x1xi32>
    %42 = arith.sitofp %41 : vector<8x1xi32> to vector<8x1xf32>
    %c0_15 = arith.constant 0 : index
    %c0_16 = arith.constant 0 : index
    %43 = vector.load %arg4[%c0_15, %c0_16] : memref<1x1xf32, #tpu.memory_space<vmem>>, vector<1x1xf32>
    %44 = arith.mulf %34, %42 : vector<8x1xf32>
    %45 = vector.shape_cast %44 : vector<8x1xf32> to vector<1x8x1xf32>
    %cst_17 = arith.constant dense<0.000000e+00> : vector<1xf32>
    %46 = vector.multi_reduction <add>, %45, %cst_17 [1, 2] : vector<1x8x1xf32> to vector<1xf32>
    %47 = vector.shape_cast %46 : vector<1xf32> to vector<1x1x1xf32>
    %48 = vector.extract %47[0, 0, 0] : f32 from vector<1x1x1xf32>
    %49 = vector.broadcast %48 : f32 to vector<1x1xf32>
    %50 = arith.addf %43, %49 : vector<1x1xf32>
    %c0_18 = arith.constant 0 : index
    %c0_19 = arith.constant 0 : index
    %51 = vector.load %arg4[%c0_18, %c0_19] : memref<1x1xf32, #tpu.memory_space<vmem>>, vector<1x1xf32>
    tpu.vector_store %arg4[%c0_18, %c0_19], %50 {strides = array<i32>} : memref<1x1xf32, #tpu.memory_space<vmem>>, vector<1x1xf32>,
    %c0_i32_20 = arith.constant 0 : i32
    %52 = arith.cmpi eq, %arg0, %c0_i32_20 : i32
    %53 = arith.extui %52 : i1 to i32
    %c0_i32_21 = arith.constant 0 : i32
    %54 = arith.cmpi ne, %53, %c0_i32_21 : i32
    scf.if %54 {
      %c0_22 = arith.constant 0 : index
      %c0_23 = arith.constant 0 : index
      %55 = vector.load %arg4[%c0_22, %c0_23] : memref<1x1xf32, #tpu.memory_space<vmem>>, vector<1x1xf32>
      %cst_24 = arith.constant 1.250000e-01 : f32
      %56 = vector.broadcast %cst_24 : f32 to vector<1x1xf32>
      %57 = arith.mulf %55, %56 : vector<1x1xf32>
      %c0_25 = arith.constant 0 : index
      %c0_26 = arith.constant 0 : index
      %58 = vector.load %arg4[%c0_25, %c0_26] : memref<1x1xf32, #tpu.memory_space<vmem>>, vector<1x1xf32>
      tpu.vector_store %arg4[%c0_25, %c0_26], %57 {strides = array<i32>} : memref<1x1xf32, #tpu.memory_space<vmem>>, vector<1x1xf32>,
    } else {
    }
    return
  }
  func.func @transform_0(%arg0: i32) -> (i32, i32) {
    %c0_i32 = arith.constant 0 : i32
    %c0_i32_0 = arith.constant 0 : i32
    return %arg0, %c0_i32 : i32, i32
  }
  func.func @transform_1(%arg0: i32) -> (i32, i32) {
    %c0_i32 = arith.constant 0 : i32
    %c0_i32_0 = arith.constant 0 : i32
    return %arg0, %c0_i32 : i32, i32
  }
  func.func @transform_2(%arg0: i32) -> (i32, i32) {
    %c0_i32 = arith.constant 0 : i32
    %c0_i32_0 = arith.constant 0 : i32
    return %arg0, %c0_i32 : i32, i32
  }
  func.func @transform_3(%arg0: i32) -> (i32, i32) {
    %c0_i32 = arith.constant 0 : i32
    %c0_i32_0 = arith.constant 0 : i32
    %c0_i32_1 = arith.constant 0 : i32
    return %c0_i32, %c0_i32_0 : i32, i32
  }
}

</mosaic_0001>

<llo_original>
// kernel: tpu_custom_call.1
$region0: #{tpu_custom_call.1}
  #allocation0 [shape = 'u32[]', space=smem, size = 0x4, offset = 0x4, fixed_abs, tag = 'smem constant byte address 0x4 - core index']
  #allocation1 [shape = 'u32[144,128]{1,0:T(1,128)}', space=vmem, size = 0x12000, scoped, tag = 'internal scratch']
  %s0 = inlined_call_operand.vmem [shape: f32[8,32], index: 0, kind: input, shape index: {}]
  %s1 = inlined_call_operand.hbm [shape: f32[8,32], index: 1, kind: input, shape index: {}]
  %s2 = inlined_call_operand.vmem [shape: f32[8,1], index: 2, kind: input, shape index: {}]
  %s3 = inlined_call_operand.hbm [shape: f32[1,1], index: 3, kind: output, shape index: {}]
  %s4 = sld [smem:[#allocation0]]
  $region34: #{tpu_custom_call.1} parent=0
    _
  %s6 = ssub.s32 1, %s4
  %s7 = scalar_select 0, %s6, %s4
  $region1: #{tpu_custom_call.1} parent=0
    #allocation2 [shape = 'u8[4096]{0}', space=vmem, size = 0x1000, scoped, tag = 'input window, operand 1, single buffered']
    #allocation3 [shape = 's32[1]{0}', space=sflag, size = 0x4, scoped, tag = 'scoped memory for tpu_custom_call.1']
    #allocation4 [shape = 's32[1]{0}', space=sflag, size = 0x4, scoped, tag = 'scoped memory for tpu_custom_call.1']
    #allocation5 [shape = 'u8[512]{0}', space=vmem, size = 0x400, scoped, tag = 'output window, operand 0, single buffered']
    %8 = vsyncpa [#allocation3], 0
    %9 = vsyncpa [#allocation4], 0
    // Predicated region
    $region2: #{tpu_custom_call.1} parent=1 // pred_check
      _
    $region3: #{tpu_custom_call.1} parent=1 // pred_check_branch
      %11 = sbr.rel (0) target = $region5
    $region4: #{tpu_custom_call.1} parent=1 // pred_region
      _
    $region5: #{tpu_custom_call.1} parent=1 // pred_fallthru
      _
    // Predicated region
    $region6: #{tpu_custom_call.1} parent=1 // pred_check
      _
    $region7: #{tpu_custom_call.1} parent=1 // pred_check_branch
      %13 = sbr.rel (0) target = $region9
    $region8: #{tpu_custom_call.1} parent=1 // pred_region
      %s15 = ssub.s32 128, 128
      %16 = vsyncadd [#allocation3], %s15
      %s18 = sshll.u32 [#allocation2], 4
      %s19 = int_to_ptr.vmem [resolvable:$true] %s18
      %21 = dma.hbm_to_vmem [thread:$0]  %s1, 128, %s19, [#allocation3]
    $region9: #{tpu_custom_call.1} parent=1 // pred_fallthru
      _
    // Predicated region
    $region10: #{tpu_custom_call.1} parent=1 // pred_check
      _
    $region11: #{tpu_custom_call.1} parent=1 // pred_check_branch
      %23 = sbr.rel (0) target = $region13
    $region12: #{tpu_custom_call.1} parent=1 // pred_region
      _
    $region13: #{tpu_custom_call.1} parent=1 // pred_fallthru
      _
    // Predicated region
    $region14: #{tpu_custom_call.1} parent=1 // pred_check
      _
    $region15: #{tpu_custom_call.1} parent=1 // pred_check_branch
      %25 = sbr.rel (0) target = $region17
    $region16: #{tpu_custom_call.1} parent=1 // pred_region
      %26 = dma.done [#allocation3], 128
    $region17: #{tpu_custom_call.1} parent=1 // pred_fallthru
      _
    %p27 = scmp.eq.s32.totalorder 0, 0
    // Predicated region
    $region18: #{tpu_custom_call.1} parent=1 // pred_check
      %p28 = pneg %p27
    $region19: #{tpu_custom_call.1} parent=1 // pred_check_branch
      %30 = sbr.rel (%p28) target = $region21
    $region20: #{tpu_custom_call.1} parent=1 // pred_region
      %vm31 = vcmask 0
      %32 = vst.msk [vmem:[#allocation5] sm:$0x1] %vm31, 0.0
    $region21: #{tpu_custom_call.1} parent=1 // pred_fallthru
      _
    %v33 = vld [vmem:[%s0] sm:$0xff]
    %v34 = vld [vmem:[#allocation2] sm:$0xff]
    %v35 = vld [vmem:[%s2] sm:$0xff]
    %v36 = vmul.f32 %v33, %v34
    %vm37 = vcmask 261120
    %v38 = vsel %vm37, %v36, 0.0
    %39 = vadd.xlane.f32.xlu0 %v38
    %v40 = vpop.xlane.xlu0 %39
    %v41 = vmul.f32 %v33, %v33
    %v42 = vsel %vm37, %v41, 0.0
    %43 = vadd.xlane.f32.xlu0 %v42
    %v44 = vpop.xlane.xlu0 %43
    %v45 = vmul.f32 %v34, %v34
    %v46 = vsel %vm37, %v45, 0.0
    %47 = vadd.xlane.f32.xlu0 %v46
    %v48 = vpop.xlane.xlu0 %47
    %v49 = vmul.f32 %v44, %v48
    %v50 = vmax.f32 %v49, 1e-16
    %v51 = vrsqrt.pop %v50
    %v52 = vmul.f32 %v40, %v51
    %v53 = vsub.f32 1.0, %v52
    %v54 = vmul.f32 %v35, %v53
    %v55 = vmul.f32 %v54, %v53
    %v56 = vsub.f32 1.0, %v35
    %v57 = vsub.f32 1.0, %v53
    %v58 = vmax.f32 %v57, 0.0
    %v59 = vmul.f32 %v58, %v58
    %v60 = vmul.f32 %v56, %v59
    %v61 = vadd.f32 %v55, %v60
    %v62 = vmul.f32 %v61, 0.5
    %s63 = smul.u32 0, 8
    %v64 = vlaneseq
    %v65 = vshrl.u32 %v64, 7
    %v66 = vstv %s63
    %v67 = vadd.s32 %v66, %v65
    %vm68 = vcmp.lt.s32.totalorder %v67, 8
    %v69 = vsel %vm68, 1, 0
    %v70 = vcvt.s32.f32 %v69
    %v71 = vld [vmem:[#allocation5] sm:$0x1]
    %v72 = vmul.f32 %v62, %v70
    %vm73 = vcmask 7168
    %v74 = vsel %vm73, %v72, 0.0
    %75 = vadd.xlane.f32.xlu0 %v74
    %v76 = vpop.xlane.xlu0 %75
    %v77 = vrot.slane %v76, 4
    %v78 = vadd.f32 %v76, %v77
    %v79 = vrot.slane %v78, 2
    %v80 = vadd.f32 %v78, %v79
    %v81 = vrot.slane %v80, 1
    %v82 = vadd.f32 %v80, %v81
    %s83 = vtos %v82
    %v84 = vstv %s83
    %v85 = vadd.f32 %v71, %v84
    %vm86 = vcmask 0
    %87 = vst.msk [vmem:[#allocation5] sm:$0x1] %vm86, %v85
    // Predicated region
    $region22: #{tpu_custom_call.1} parent=1 // pred_check
      %p88 = pneg %p27
    $region23: #{tpu_custom_call.1} parent=1 // pred_check_branch
      %90 = sbr.rel (%p88) target = $region25
    $region24: #{tpu_custom_call.1} parent=1 // pred_region
      %v91 = vld [vmem:[#allocation5] sm:$0x1]
      %v92 = vmul.f32 %v91, 0.125
      %93 = vst.msk [vmem:[#allocation5] sm:$0x1] %vm86, %v92
    $region25: #{tpu_custom_call.1} parent=1 // pred_fallthru
      _
    // Predicated region
    $region26: #{tpu_custom_call.1} parent=1 // pred_check
      _
    $region27: #{tpu_custom_call.1} parent=1 // pred_check_branch
      %95 = sbr.rel (0) target = $region29
    $region28: #{tpu_custom_call.1} parent=1 // pred_region
      %s97 = ssub.s32 16, 16
      %98 = vsyncadd [#allocation4], %s97
      %s100 = sshll.u32 [#allocation5], 4
      %s101 = int_to_ptr.vmem [resolvable:$true] %s100
      %103 = dma.vmem_to_hbm [thread:$0]  %s101, 16, %s3, [#allocation4]
    $region29: #{tpu_custom_call.1} parent=1 // pred_fallthru
      _
    // Predicated region
    $region30: #{tpu_custom_call.1} parent=1 // pred_check
      _
    $region31: #{tpu_custom_call.1} parent=1 // pred_check_branch
      %105 = sbr.rel (0) target = $region33
    $region32: #{tpu_custom_call.1} parent=1 // pred_region
      %106 = dma.done [#allocation4], 16
    $region33: #{tpu_custom_call.1} parent=1 // pred_fallthru
      _
    %107 = vsyncpa [#allocation3], 1
    %108 = vsyncpa [#allocation4], 1

</llo_original>
